<compile_context>
chip_gen: v6e
topology: v6e:2x2x1
jax: 0.10.0
libtpu: 0.0.40
codegen_flags: <defaults>
</compile_context>

<pallas_src>
import functools

import jax
import jax.numpy as jnp
from jax.experimental import pallas as pl
from jax.experimental.pallas import tpu as pltpu


def _round_up(x, m):
    return (x + m - 1) // m * m


def conv_stats_kernel(w_ref, xcol_ref, bias_ref, y_ref, sum_ref, ssq_ref,
                      *, n_valid, tn, has_pad):
    """Pass 1: im2col Conv1d as a single MXU matmul + bias, plus per-tile
    partial sums / sums-of-squares for the BatchNorm statistics.

    w_ref:    (Cout, CinK_pad)   conv weight, contraction-dim padded, mxu dtype
    xcol_ref: (CinK_pad, TN)     im2col slab tile, mxu dtype
    bias_ref: (Cout, 1)          conv bias, f32
    y_ref:    (Cout, TN)         conv output tile (lane-dense), f32
    sum_ref:  (1, Cout, 1)       per-tile per-channel sum of valid columns
    ssq_ref:  (1, Cout, 1)       per-tile per-channel sum of squares
    """
    i = pl.program_id(0)

    # One lane-dense MXU matmul; f32 accumulation regardless of operand dtype.
    y = jnp.dot(w_ref[...], xcol_ref[...], preferred_element_type=jnp.float32)
    y = y + bias_ref[...]                      # (Cout, 1) broadcast, once per tile
    y_ref[...] = y                             # unmasked stores (TN % 128 == 0)

    if has_pad:
        # Columns >= n_valid are zero-padding; their conv output equals the
        # bias (not zero) and must not contribute to the BN statistics.
        # (1, TN) mask -> iota/compare cost is per-column only.
        col = i * tn + jax.lax.broadcasted_iota(jnp.int32, (1, tn), 1)
        yv = y * (col < n_valid).astype(jnp.float32)
    else:
        yv = y

    sum_ref[...] = jnp.sum(yv, axis=1, keepdims=True)[None]        # (1, Cout, 1)
    ssq_ref[...] = jnp.sum(yv * yv, axis=1, keepdims=True)[None]   # (1, Cout, 1)


def bn_relu_kernel(y_ref, scale_ref, shift_ref, o_ref):
    """Pass 2: BatchNorm folded to a per-channel affine, fused with ReLU."""
    o_ref[...] = jnp.maximum(y_ref[...] * scale_ref[...] + shift_ref[...], 0.0)


def conv_block(x, weight, bias, gamma, beta, *, padding=1, eps=1e-5,
               mxu_dtype=jnp.float32, tn_max=1024):
    """x: (B, Cin, L) f32; weight: (Cout, Cin, K); bias/gamma/beta: (Cout,).

    mxu_dtype: jnp.float32 (exact) or jnp.bfloat16 (v6e/v7x MXU throughput;
               accumulation and BN stats stay f32).
    """
    B, Cin, L = x.shape
    Cout, _, K = weight.shape
    Lpad = L + 2 * padding
    Lout = Lpad - K + 1
    N = B * Lout

    # ---------- Glue (plain JAX): padding, im2col, parameter re-layout ----------
    x_pad = jnp.pad(x.astype(jnp.float32), ((0, 0), (0, 0), (padding, padding)))
    # x_col[(cin*K + k), (b*Lout + l)] = x_pad[b, cin, l + k]
    shifted = jnp.stack([x_pad[:, :, k:k + Lout] for k in range(K)], axis=2)  # (B,Cin,K,Lout)
    x_col = shifted.transpose(1, 2, 0, 3).reshape(Cin * K, N)

    CinK = Cin * K
    CinK_pad = _round_up(CinK, 8)              # sublane-aligned contraction dim

    # Lane-dense tile (multiple of 128), capped so double-buffered input/output
    # tiles stay well inside the 32 MiB scoped VMEM budget (valid on all gens).
    itemsize = jnp.dtype(mxu_dtype).itemsize
    col_bytes = CinK_pad * itemsize + Cout * 4           # x_col col + y col
    tn_cap = max(128, (24 * 1024 * 1024) // (2 * col_bytes) // 128 * 128)
    tn = min(tn_max, tn_cap, _round_up(N, 128))
    Npad = _round_up(N, tn)
    num_tiles = Npad // tn
    has_pad = Npad != N

    x_col = jnp.pad(x_col, ((0, CinK_pad - CinK), (0, Npad - N))).astype(mxu_dtype)
    w2d = jnp.pad(weight.astype(jnp.float32).reshape(Cout, CinK),
                  ((0, 0), (0, CinK_pad - CinK))).astype(mxu_dtype)
    b2 = bias.reshape(Cout, 1).astype(jnp.float32)

    cparams = pltpu.CompilerParams(
        dimension_semantics=("parallel",),     # v7x: shard tiles across 2 TCs
        vmem_limit_bytes=32 * 1024 * 1024)     # explicit, within v5e/v6e/v7x budgets

    # ---------- Pass 1: conv (+bias) and per-tile BN partial statistics ----------
    kernel1 = functools.partial(conv_stats_kernel, n_valid=N, tn=tn,
                                has_pad=has_pad)
    y, sums, ssqs = pl.pallas_call(
        kernel1,
        out_shape=(jax.ShapeDtypeStruct((Cout, Npad), jnp.float32),
                   jax.ShapeDtypeStruct((num_tiles, Cout, 1), jnp.float32),
                   jax.ShapeDtypeStruct((num_tiles, Cout, 1), jnp.float32)),
        grid=(num_tiles,),
        in_specs=[
            pl.BlockSpec((Cout, CinK_pad), lambda i: (0, 0)),   # weights: resident
            pl.BlockSpec((CinK_pad, tn), lambda i: (0, i)),     # im2col tile
            pl.BlockSpec((Cout, 1), lambda i: (0, 0)),          # bias: resident
        ],
        out_specs=(
            pl.BlockSpec((Cout, tn), lambda i: (0, i)),         # lane-dense y tile
            pl.BlockSpec((1, Cout, 1), lambda i: (i, 0, 0)),    # per-tile sum
            pl.BlockSpec((1, Cout, 1), lambda i: (i, 0, 0)),    # per-tile sumsq
        ),
        compiler_params=cparams,
    )(w2d, x_col, b2)

    # Tiny cross-tile reduction + fold BN into per-channel scale / shift (f32).
    mean = jnp.sum(sums[:, :, 0], axis=0) / N
    ex2 = jnp.sum(ssqs[:, :, 0], axis=0) / N
    var = jnp.maximum(ex2 - mean * mean, 0.0)                   # biased variance
    scale_vec = gamma.astype(jnp.float32) * jax.lax.rsqrt(var + eps)
    shift_vec = beta.astype(jnp.float32) - mean * scale_vec
    scale = scale_vec.reshape(Cout, 1)
    shift = shift_vec.reshape(Cout, 1)

    # ---------- Pass 2: fused per-channel affine + ReLU ----------
    out = pl.pallas_call(
        bn_relu_kernel,
        out_shape=jax.ShapeDtypeStruct((Cout, Npad), jnp.float32),
        grid=(num_tiles,),
        in_specs=[
            pl.BlockSpec((Cout, tn), lambda i: (0, i)),
            pl.BlockSpec((Cout, 1), lambda i: (0, 0)),
            pl.BlockSpec((Cout, 1), lambda i: (0, 0)),
        ],
        out_specs=pl.BlockSpec((Cout, tn), lambda i: (0, i)),
        compiler_params=cparams,
    )(y, scale, shift)

    # Drop lane padding, restore PyTorch (B, Cout, Lout) layout.
    return out[:, :N].reshape(Cout, B, Lout).transpose(1, 0, 2)


def reference_forward(x, weight, bias, gamma, beta, *, padding=1, eps=1e-5):
    """Pure-JAX reference of the PyTorch ConvBlock.forward (training-mode BN)."""
    y = jax.lax.conv_general_dilated(
        x, weight, window_strides=(1,), padding=[(padding, padding)],
        dimension_numbers=("NCH", "OIH", "NCH"))
    y = y + bias[None, :, None]
    mean = jnp.mean(y, axis=(0, 2), keepdims=True)
    var = jnp.mean((y - mean) ** 2, axis=(0, 2), keepdims=True)
    y = (y - mean) / jnp.sqrt(var + eps)
    y = y * gamma[None, :, None] + beta[None, :, None]
    return jnp.maximum(y, 0.0)


if __name__ == "__main__":
    # ConvBlock(in_channels=4, out_channels=8, kernel_size=3, padding=1) on (B, Cin, L).
    B, Cin, Cout, L, K, PAD = 2, 4, 8, 16, 3, 1

    key = jax.random.PRNGKey(0)
    kx, kw, kb = jax.random.split(key, 3)

    x = jax.random.normal(kx, (B, Cin, L), dtype=jnp.float32)

    # PyTorch Conv1d default init: uniform +-1/sqrt(fan_in).
    bound = 1.0 / (Cin * K) ** 0.5
    weight = jax.random.uniform(kw, (Cout, Cin, K), jnp.float32, -bound, bound)
    bias = jax.random.uniform(kb, (Cout,), jnp.float32, -bound, bound)
    # BatchNorm1d default init: weight=1, bias=0.
    gamma = jnp.ones((Cout,), jnp.float32)
    beta = jnp.zeros((Cout,), jnp.float32)

    # TODO(synk): BatchNorm running_mean/running_var buffer updates are host-side
    # module state and are not part of the forward math implemented here.
    ref = reference_forward(x, weight, bias, gamma, beta, padding=PAD)

    # f32 MXU operands: strict check against the reference.
    out = conv_block(x, weight, bias, gamma, beta, padding=PAD,
                     mxu_dtype=jnp.float32)
    out = jax.block_until_ready(out)
    assert out.shape == (B, Cout, L), out.shape
    assert jnp.allclose(out, ref, atol=1e-5, rtol=1e-5), \
        f"max abs err {jnp.max(jnp.abs(out - ref))}"

    # bf16 MXU operands (v6e/v7x throughput path); f32 accumulation & BN stats.
    out_bf16 = conv_block(x, weight, bias, gamma, beta, padding=PAD,
                          mxu_dtype=jnp.bfloat16)
    out_bf16 = jax.block_until_ready(out_bf16)
    assert out_bf16.shape == (B, Cout, L), out_bf16.shape
    assert jnp.allclose(out_bf16, ref, atol=5e-2, rtol=5e-2), \
        f"bf16 max abs err {jnp.max(jnp.abs(out_bf16 - ref))}"

    print("KERNEL_OK")
</pallas_src>

<mosaic_0001>
module attributes {stable_mosaic.version = 11 : i64} {
  func.func @conv_stats_kernel(%arg0: i32, %arg1: memref<8x16xf32, #tpu.memory_space<vmem>>, %arg2: memref<16x128xf32, #tpu.memory_space<vmem>>, %arg3: memref<8x1xf32, #tpu.memory_space<vmem>>, %arg4: memref<8x128xf32, #tpu.memory_space<vmem>>, %arg5: memref<1x8x1xf32, #tpu.memory_space<vmem>>, %arg6: memref<1x8x1xf32, #tpu.memory_space<vmem>>) attributes {dimension_semantics = [#tpu.dimension_semantics<parallel>], iteration_bounds = array<i64: 1>, scalar_prefetch = 0 : i64, scratch_operands = 0 : i64, tpu.core_type = #tpu.core_type<tc>, window_params = [{pipeline_mode = #tpu.pipeline_mode<synchronous>, transform_indices = @transform_0, window_bounds = array<i64: 8, 16>}, {transform_indices = @transform_1, window_bounds = array<i64: 16, 128>}, {pipeline_mode = #tpu.pipeline_mode<synchronous>, transform_indices = @transform_2, window_bounds = array<i64: 8, 1>}, {transform_indices = @transform_3, window_bounds = array<i64: 8, 128>}, {transform_indices = @transform_4, window_bounds = array<i64: 1, 8, 1>}, {transform_indices = @transform_5, window_bounds = array<i64: 1, 8, 1>}]} {
    %c0 = arith.constant 0 : index
    %c0_0 = arith.constant 0 : index
    %0 = vector.load %arg1[%c0, %c0_0] : memref<8x16xf32, #tpu.memory_space<vmem>>, vector<8x16xf32>
    %c0_1 = arith.constant 0 : index
    %c0_2 = arith.constant 0 : index
    %1 = vector.load %arg2[%c0_1, %c0_2] : memref<16x128xf32, #tpu.memory_space<vmem>>, vector<16x128xf32>
    %cst = arith.constant dense<0.000000e+00> : vector<8x128xf32>
    %2 = tpu.matmul %0, %1, %cst {dimension_numbers = #tpu.dot_dimension_numbers<[1], [0], [0], [1], [0, 0, 1, 1], [], []>} : vector<8x16xf32>, vector<16x128xf32>, vector<8x128xf32> -> vector<8x128xf32>
    %c0_3 = arith.constant 0 : index
    %c0_4 = arith.constant 0 : index
    %3 = vector.load %arg3[%c0_3, %c0_4] : memref<8x1xf32, #tpu.memory_space<vmem>>, vector<8x1xf32>
    %4 = vector.broadcast %3 : vector<8x1xf32> to vector<8x128xf32>
    %5 = arith.addf %2, %4 : vector<8x128xf32>
    %c0_5 = arith.constant 0 : index
    %c0_6 = arith.constant 0 : index
    %6 = vector.load %arg4[%c0_5, %c0_6] : memref<8x128xf32, #tpu.memory_space<vmem>>, vector<8x128xf32>
    tpu.vector_store %arg4[%c0_5, %c0_6], %5 {strides = array<i32>} : memref<8x128xf32, #tpu.memory_space<vmem>>, vector<8x128xf32>,
    %c128_i32 = arith.constant 128 : i32
    %7 = arith.muli %arg0, %c128_i32 : i32
    %8 = tpu.iota {dimensions = array<i32: 1>} : vector<1x128xi32>
    %9 = vector.broadcast %7 : i32 to vector<1x128xi32>
    %10 = arith.addi %9, %8 : vector<1x128xi32>
    %c32_i32 = arith.constant 32 : i32
    %11 = vector.broadcast %c32_i32 : i32 to vector<1x128xi32>
    %12 = arith.cmpi slt, %10, %11 : vector<1x128xi32>
    %13 = arith.extui %12 : vector<1x128xi1> to vector<1x128xi32>
    %14 = arith.sitofp %13 : vector<1x128xi32> to vector<1x128xf32>
    %15 = vector.broadcast %14 : vector<1x128xf32> to vector<8x128xf32>
    %16 = arith.mulf %5, %15 : vector<8x128xf32>
    %cst_7 = arith.constant dense<0.000000e+00> : vector<8xf32>
    %17 = vector.multi_reduction <add>, %16, %cst_7 [1] : vector<8x128xf32> to vector<8xf32>
    %18 = vector.shape_cast %17 : vector<8xf32> to vector<8x1xf32>
    %19 = vector.shape_cast %18 : vector<8x1xf32> to vector<1x8x1xf32>
    %c0_8 = arith.constant 0 : index
    %c0_9 = arith.constant 0 : index
    %c0_10 = arith.constant 0 : index
    %20 = vector.load %arg5[%c0_8, %c0_9, %c0_10] : memref<1x8x1xf32, #tpu.memory_space<vmem>>, vector<1x8x1xf32>
    tpu.vector_store %arg5[%c0_8, %c0_9, %c0_10], %19 {strides = array<i32>} : memref<1x8x1xf32, #tpu.memory_space<vmem>>, vector<1x8x1xf32>,
    %21 = arith.mulf %16, %16 : vector<8x128xf32>
    %cst_11 = arith.constant dense<0.000000e+00> : vector<8xf32>
    %22 = vector.multi_reduction <add>, %21, %cst_11 [1] : vector<8x128xf32> to vector<8xf32>
    %23 = vector.shape_cast %22 : vector<8xf32> to vector<8x1xf32>
    %24 = vector.shape_cast %23 : vector<8x1xf32> to vector<1x8x1xf32>
    %c0_12 = arith.constant 0 : index
    %c0_13 = arith.constant 0 : index
    %c0_14 = arith.constant 0 : index
    %25 = vector.load %arg6[%c0_12, %c0_13, %c0_14] : memref<1x8x1xf32, #tpu.memory_space<vmem>>, vector<1x8x1xf32>
    tpu.vector_store %arg6[%c0_12, %c0_13, %c0_14], %24 {strides = array<i32>} : memref<1x8x1xf32, #tpu.memory_space<vmem>>, vector<1x8x1xf32>,
    return
  }
  func.func @transform_0(%arg0: i32) -> (i32, i32) {
    %c0_i32 = arith.constant 0 : i32
    %c0_i32_0 = arith.constant 0 : i32
    %c0_i32_1 = arith.constant 0 : i32
    return %c0_i32, %c0_i32_0 : i32, i32
  }
  func.func @transform_1(%arg0: i32) -> (i32, i32) {
    %c0_i32 = arith.constant 0 : i32
    %c0_i32_0 = arith.constant 0 : i32
    return %c0_i32, %arg0 : i32, i32
  }
  func.func @transform_2(%arg0: i32) -> (i32, i32) {
    %c0_i32 = arith.constant 0 : i32
    %c0_i32_0 = arith.constant 0 : i32
    %c0_i32_1 = arith.constant 0 : i32
    return %c0_i32, %c0_i32_0 : i32, i32
  }
  func.func @transform_3(%arg0: i32) -> (i32, i32) {
    %c0_i32 = arith.constant 0 : i32
    %c0_i32_0 = arith.constant 0 : i32
    return %c0_i32, %arg0 : i32, i32
  }
  func.func @transform_4(%arg0: i32) -> (i32, i32, i32) {
    %c0_i32 = arith.constant 0 : i32
    %c0_i32_0 = arith.constant 0 : i32
    %c0_i32_1 = arith.constant 0 : i32
    return %arg0, %c0_i32, %c0_i32_0 : i32, i32, i32
  }
  func.func @transform_5(%arg0: i32) -> (i32, i32, i32) {
    %c0_i32 = arith.constant 0 : i32
    %c0_i32_0 = arith.constant 0 : i32
    %c0_i32_1 = arith.constant 0 : i32
    return %arg0, %c0_i32, %c0_i32_0 : i32, i32, i32
  }
}

</mosaic_0001>

<llo_original>
// kernel: tpu_custom_call.1
$region0: #{tpu_custom_call.1}
  #allocation0 [shape = 'u32[]', space=smem, size = 0x4, offset = 0x4, fixed_abs, tag = 'smem constant byte address 0x4 - core index']
  #allocation1 [shape = 'u32[144,128]{1,0:T(1,128)}', space=vmem, size = 0x12000, scoped, tag = 'internal scratch']
  %s0 = inlined_call_operand.vmem [shape: f32[8,16], index: 0, kind: input, shape index: {}]
  %s1 = inlined_call_operand.hbm [shape: f32[16,128], index: 1, kind: input, shape index: {}]
  %s2 = inlined_call_operand.vmem [shape: f32[8,1], index: 2, kind: input, shape index: {}]
  %s3 = inlined_call_operand.hbm [shape: f32[8,128], index: 3, kind: output, shape index: {0}]
  %s4 = inlined_call_operand.vmem [shape: f32[1,8,1], index: 4, kind: output, shape index: {1}]
  %s5 = inlined_call_operand.vmem [shape: f32[1,8,1], index: 5, kind: output, shape index: {2}]
  %6 = xla_tuple %s3, %s4, %s5
  %s7 = sld [smem:[#allocation0]]
  $region42: #{tpu_custom_call.1} parent=0
    _
  %s9 = ssub.s32 1, %s7
  %s10 = scalar_select 0, %s9, %s7
  $region1: #{tpu_custom_call.1} parent=0
    #allocation2 [shape = 'u8[8192]{0}', space=vmem, size = 0x2000, scoped, tag = 'input window, operand 1, single buffered']
    #allocation3 [shape = 's32[1]{0}', space=sflag, size = 0x4, scoped, tag = 'scoped memory for tpu_custom_call.1']
    #allocation4 [shape = 's32[1]{0}', space=sflag, size = 0x4, scoped, tag = 'scoped memory for tpu_custom_call.1']
    #allocation5 [shape = 'u8[4096]{0}', space=vmem, size = 0x1000, scoped, tag = 'output window, operand 0, single buffered']
    %11 = vsyncpa [#allocation3], 0
    %12 = vsyncpa [#allocation4], 0
    // Predicated region
    $region2: #{tpu_custom_call.1} parent=1 // pred_check
      _
    $region3: #{tpu_custom_call.1} parent=1 // pred_check_branch
      %14 = sbr.rel (0) target = $region5
    $region4: #{tpu_custom_call.1} parent=1 // pred_region
      _
    $region5: #{tpu_custom_call.1} parent=1 // pred_fallthru
      _
    // Predicated region
    $region6: #{tpu_custom_call.1} parent=1 // pred_check
      _
    $region7: #{tpu_custom_call.1} parent=1 // pred_check_branch
      %16 = sbr.rel (0) target = $region9
    $region8: #{tpu_custom_call.1} parent=1 // pred_region
      %s18 = ssub.s32 256, 256
      %19 = vsyncadd [#allocation3], %s18
      %s20 = sshll.u32 [#allocation2], 4
      %s21 = int_to_ptr.vmem [resolvable:$true] %s20
      %26 = dma.hbm_to_vmem [thread:$0]  %s1, 256, %s21, [#allocation3], 128, 128, 8
    $region9: #{tpu_custom_call.1} parent=1 // pred_fallthru
      _
    // Predicated region
    $region10: #{tpu_custom_call.1} parent=1 // pred_check
      _
    $region11: #{tpu_custom_call.1} parent=1 // pred_check_branch
      %28 = sbr.rel (0) target = $region13
    $region12: #{tpu_custom_call.1} parent=1 // pred_region
      _
    $region13: #{tpu_custom_call.1} parent=1 // pred_fallthru
      _
    // Predicated region
    $region14: #{tpu_custom_call.1} parent=1 // pred_check
      _
    $region15: #{tpu_custom_call.1} parent=1 // pred_check_branch
      %30 = sbr.rel (0) target = $region17
    $region16: #{tpu_custom_call.1} parent=1 // pred_region
      %31 = dma.done [#allocation3], 256
    $region17: #{tpu_custom_call.1} parent=1 // pred_fallthru
      _
    %v32 = vld [vmem:[%s0] sm:$0xff]
    %v33 = vld [vmem:[#allocation2] sm:$0xff]
    %v34 = vld [vmem:[#allocation2 + $0x8] sm:$0xff]
    %v35 = vld [vmem:[%s2] sm:$0xff]
    %37 = vset.pattern.permute.xlu0 0
    %38 = vperm.xlu0 %37, %v35
    %v39 = vpop.permute.xlu0 %38
    %vm41 = vcmask 130048
    %v43 = vsel %vm41, %v32, 0
    %45 = vmatprep.subr.mxu0 0.0
    %46 = vmatpush1.msra.mxu0 0.0
    %47 = vmatprep.subr.mxu0 0.0
    %48 = vmatpush1.msra.mxu0 0.0
    %49 = vmatprep.subr.mxu0 0.0
    %50 = vmatpush1.msra.mxu0 0.0
    %51 = vmatprep.subr.mxu0 0.0
    %52 = vmatpush1.msra.mxu0 0.0
    %53 = vmatprep.subr.mxu0 0.0
    %54 = vmatpush1.msra.mxu0 0.0
    %55 = vmatprep.subr.mxu0 0.0
    %56 = vmatpush1.msra.mxu0 0.0
    %57 = vmatprep.subr.mxu0 0.0
    %58 = vmatpush1.msra.mxu0 0.0
    %59 = vmatprep.subr.mxu0 0.0
    %60 = vmatpush1.msra.mxu0 0.0
    %61 = vmatprep.subr.mxu0 0.0
    %62 = vmatpush1.msra.mxu0 0.0
    %63 = vmatprep.subr.mxu0 0.0
    %64 = vmatpush1.msra.mxu0 0.0
    %65 = vmatprep.subr.mxu0 0.0
    %66 = vmatpush1.msra.mxu0 0.0
    %67 = vmatprep.subr.mxu0 0.0
    %68 = vmatpush1.msra.mxu0 0.0
    %69 = vmatprep.subr.mxu0 0.0
    %70 = vmatpush1.msra.mxu0 0.0
    %71 = vmatprep.subr.mxu0 0.0
    %72 = vmatpush1.msra.mxu0 0.0
    %73 = vmatprep.subr.mxu0 0.0
    %74 = vmatpush1.msra.mxu0 %v34
    %75 = vmatprep.subr.mxu0 0.0
    %76 = vmatpush1.msra.mxu0 %v33
    %77 = vmatprep.subr.mxu0 0.0
    %78 = vmatpush2.msra.mxu0 0.0
    %79 = vmatprep.subr.mxu0 0.0
    %80 = vmatpush2.msra.mxu0 0.0
    %81 = vmatprep.subr.mxu0 0.0
    %82 = vmatpush2.msra.mxu0 0.0
    %83 = vmatprep.subr.mxu0 0.0
    %84 = vmatpush2.msra.mxu0 0.0
    %85 = vmatprep.subr.mxu0 0.0
    %86 = vmatpush2.msra.mxu0 0.0
    %87 = vmatprep.subr.mxu0 0.0
    %88 = vmatpush2.msra.mxu0 0.0
    %89 = vmatprep.subr.mxu0 0.0
    %90 = vmatpush2.msra.mxu0 0.0
    %91 = vmatprep.subr.mxu0 0.0
    %92 = vmatpush2.msra.mxu0 0.0
    %93 = vmatprep.subr.mxu0 0.0
    %94 = vmatpush2.msra.mxu0 0.0
    %95 = vmatprep.subr.mxu0 0.0
    %96 = vmatpush2.msra.mxu0 0.0
    %97 = vmatprep.subr.mxu0 0.0
    %98 = vmatpush2.msra.mxu0 0.0
    %99 = vmatprep.subr.mxu0 0.0
    %100 = vmatpush2.msra.mxu0 0.0
    %101 = vmatprep.subr.mxu0 0.0
    %102 = vmatpush2.msra.mxu0 0.0
    %103 = vmatprep.subr.mxu0 0.0
    %104 = vmatpush2.msra.mxu0 0.0
    %105 = vmatprep.subr.mxu0 0.0
    %106 = vmatpush2.msra.mxu0 0.0
    %107 = vmatprep.subr.mxu0 0.0
    %108 = vmatpush2.msra.mxu0 0.0
    %109 = vmatprep.mubr.f32.mxu0 0.0
    %110 = vmatmul.mubr.f32.gmra.mxu0 %v43
    %v111 = vpop.f32.mrf.mxu0
    %v112 = vadd.f32 %v39, %v111
    %v113 = vpop.f32.mrf.mxu0
    %114 = vdwg.mxu0
    %115 = vst [vmem:[#allocation5] sm:$0xff] %v112
    %s116 = smul.u32 0, 128
    %v117 = vlaneseq
    %v118 = vand.u32 %v117, 127
    %v119 = vstv %s116
    %v120 = vadd.s32 %v119, %v118
    %vm121 = vcmp.lt.s32.totalorder %v120, 32
    %v122 = vsel %vm121, 1, 0
    %v123 = vcvt.s32.f32 %v122
    %v124 = vmul.f32 %v112, %v123
    %125 = vadd.xlane.f32.xlu0 %v124
    %v126 = vpop.xlane.xlu0 %125
    %vm127 = vcmask 7168
    %128 = vst.msk [vmem:[%s4] sm:$0xff] %vm127, %v126
    %v129 = vmul.f32 %v124, %v124
    %130 = vadd.xlane.f32.xlu0 %v129
    %v131 = vpop.xlane.xlu0 %130
    %132 = vst.msk [vmem:[%s5] sm:$0xff] %vm127, %v131
    // Predicated region
    $region18: #{tpu_custom_call.1} parent=1 // pred_check
      _
    $region19: #{tpu_custom_call.1} parent=1 // pred_check_branch
      %134 = sbr.rel (0) target = $region21
    $region20: #{tpu_custom_call.1} parent=1 // pred_region
      %s136 = ssub.s32 128, 128
      %137 = vsyncadd [#allocation4], %s136
      %s139 = sshll.u32 [#allocation5], 4
      %s140 = int_to_ptr.vmem [resolvable:$true] %s139
      %142 = dma.vmem_to_hbm [thread:$0]  %s140, 128, %s3, [#allocation4]
    $region21: #{tpu_custom_call.1} parent=1 // pred_fallthru
      _
    // Predicated region
    $region22: #{tpu_custom_call.1} parent=1 // pred_check
      _
    $region23: #{tpu_custom_call.1} parent=1 // pred_check_branch
      %144 = sbr.rel (0) target = $region25
    $region24: #{tpu_custom_call.1} parent=1 // pred_region
      _
    $region25: #{tpu_custom_call.1} parent=1 // pred_fallthru
      _
    // Predicated region
    $region26: #{tpu_custom_call.1} parent=1 // pred_check
      _
    $region27: #{tpu_custom_call.1} parent=1 // pred_check_branch
      %146 = sbr.rel (0) target = $region29
    $region28: #{tpu_custom_call.1} parent=1 // pred_region
      _
    $region29: #{tpu_custom_call.1} parent=1 // pred_fallthru
      _
    // Predicated region
    $region30: #{tpu_custom_call.1} parent=1 // pred_check
      _
    $region31: #{tpu_custom_call.1} parent=1 // pred_check_branch
      %148 = sbr.rel (0) target = $region33
    $region32: #{tpu_custom_call.1} parent=1 // pred_region
      %149 = dma.done [#allocation4], 128
    $region33: #{tpu_custom_call.1} parent=1 // pred_fallthru
      _
    // Predicated region
    $region34: #{tpu_custom_call.1} parent=1 // pred_check
      _
    $region35: #{tpu_custom_call.1} parent=1 // pred_check_branch
      %151 = sbr.rel (0) target = $region37
    $region36: #{tpu_custom_call.1} parent=1 // pred_region
      _
    $region37: #{tpu_custom_call.1} parent=1 // pred_fallthru
      _
    // Predicated region
    $region38: #{tpu_custom_call.1} parent=1 // pred_check
      _
    $region39: #{tpu_custom_call.1} parent=1 // pred_check_branch
      %153 = sbr.rel (0) target = $region41
    $region40: #{tpu_custom_call.1} parent=1 // pred_region
      _
    $region41: #{tpu_custom_call.1} parent=1 // pred_fallthru
      _
    %154 = vsyncpa [#allocation3], 1
    %155 = vsyncpa [#allocation4], 1

</llo_original>
